<compile_context>
chip_gen: v6e
topology: v6e:2x2x1
jax: 0.10.0
libtpu: 0.0.40
codegen_flags: <defaults>
</compile_context>

<pallas_src>
import jax
import jax.numpy as jnp
import numpy as np
from jax.experimental import pallas as pl
from jax.experimental.pallas import tpu as pltpu


def _round_up(x, m):
    return ((x + m - 1) // m) * m


def _down_layer_kernel(wt_ref, p_ref, b_ref, o_ref):
    # wt_ref: (Cout_pad, KKC_pad)  bf16   BN-folded weight, transposed
    # p_ref:  (KKC_pad, Mt)        bf16   im2col patches (transposed, lane-dense in M)
    # b_ref:  (Cout_pad, 1)        f32    folded bias (conv bias + BN shift)
    # o_ref:  (Cout_pad, Mt)       f32
    acc = jax.lax.dot_general(
        wt_ref[...], p_ref[...],
        dimension_numbers=(((1,), (0,)), ((), ())),
        preferred_element_type=jnp.float32)            # single deep MXU contraction
    y = acc + b_ref[...]                                # bias + BN shift (broadcast on lanes)
    o_ref[...] = jnp.maximum(y, 0.2 * y)                # LeakyReLU(0.2); Dropout2d eval = id


def _im2col_transposed(x_nchw, K, stride, pad, Ho, Wo):
    """(N, Cin, H, W) -> (K*K*Cin, N*Ho*Wo) patch matrix, (kh, kw, cin) major ordering."""
    N, Cin, H, W = x_nchw.shape
    xp = jnp.pad(x_nchw, ((0, 0), (0, 0), (pad, pad), (pad, pad)))
    cols = []
    for kh in range(K):
        for kw in range(K):
            cols.append(xp[:, :,
                           kh:kh + stride * (Ho - 1) + 1:stride,
                           kw:kw + stride * (Wo - 1) + 1:stride])   # (N, Cin, Ho, Wo)
    p = jnp.stack(cols, axis=0)                 # (K*K, N, Cin, Ho, Wo)
    p = jnp.transpose(p, (0, 2, 1, 3, 4))       # (K*K, Cin, N, Ho, Wo)
    return p.reshape(K * K * Cin, N * Ho * Wo)  # (KKC, M)


def down_layer_forward(x_nchw, params):
    """Forward matching down_layer(in_ch, out_ch).eval()(x) in PyTorch (NCHW in/out)."""
    w = params["conv_w"]          # (Cout, Cin, K, K)
    b = params["conv_b"]          # (Cout,)
    gamma, beta = params["bn_gamma"], params["bn_beta"]
    mean, var = params["bn_mean"], params["bn_var"]
    eps = 1e-5
    K, stride, pad = 5, 2, 2

    N, Cin, H, W = x_nchw.shape
    Cout = w.shape[0]
    Ho = (H + 2 * pad - K) // stride + 1
    Wo = (W + 2 * pad - K) // stride + 1
    M = N * Ho * Wo
    KKC = K * K * Cin

    x = x_nchw.astype(jnp.float32)

    # Fold BN (eval) into conv weight + bias (exact: conv is linear, BN follows directly).
    scale = (gamma / jnp.sqrt(var + eps)).astype(jnp.float32)         # (Cout,)
    bias_eff = ((b - mean) * scale + beta).astype(jnp.float32)        # (Cout,)
    w_kkc = jnp.transpose(w, (2, 3, 1, 0)).reshape(KKC, Cout).astype(jnp.float32)
    w_kkc = w_kkc * scale[None, :]
    wT = w_kkc.T                                                      # (Cout, KKC)

    # Padded, aligned layout: KKC -> 128 (contraction), Cout -> mult of 8 (sublanes),
    # M -> multiple of the lane-dense tile Mt (lanes).
    Cout_pad = _round_up(Cout, 8)
    KKC_pad = _round_up(KKC, 128)
    Mt = min(512, _round_up(M, 128))
    M_pad = _round_up(M, Mt)

    pT = _im2col_transposed(x, K, stride, pad, Ho, Wo)                # (KKC, M) f32
    pT = jnp.pad(pT, ((0, KKC_pad - KKC), (0, M_pad - M))).astype(jnp.bfloat16)
    wT_p = jnp.pad(wT, ((0, Cout_pad - Cout), (0, KKC_pad - KKC))).astype(jnp.bfloat16)
    b_p = jnp.pad(bias_eff, (0, Cout_pad - Cout)).reshape(Cout_pad, 1)

    grid = (M_pad // Mt,)
    out_T = pl.pallas_call(
        _down_layer_kernel,
        out_shape=jax.ShapeDtypeStruct((Cout_pad, M_pad), jnp.float32),
        grid_spec=pltpu.PrefetchScalarGridSpec(
            num_scalar_prefetch=0,
            grid=grid,
            in_specs=[
                pl.BlockSpec((Cout_pad, KKC_pad), lambda m: (0, 0)),   # weight (resident)
                pl.BlockSpec((KKC_pad, Mt), lambda m: (0, m)),         # patch tile
                pl.BlockSpec((Cout_pad, 1), lambda m: (0, 0)),         # folded bias
            ],
            out_specs=pl.BlockSpec((Cout_pad, Mt), lambda m: (0, m)),
        ),
        compiler_params=pltpu.CompilerParams(
            dimension_semantics=("parallel",)),        # v7x: shard M tiles across both TCs
    )(wT_p, pT, b_p)

    out = out_T[:Cout, :M].reshape(Cout, N, Ho, Wo)
    return jnp.transpose(out, (1, 0, 2, 3))            # -> NCHW


def down_layer_reference(x_nchw, params):
    """Pure-JAX reference (no Pallas) for numerical sanity checking."""
    eps = 1e-5
    y = jax.lax.conv_general_dilated(
        x_nchw.astype(jnp.float32), params["conv_w"].astype(jnp.float32),
        window_strides=(2, 2), padding=[(2, 2), (2, 2)],
        dimension_numbers=("NCHW", "OIHW", "NCHW"))
    y = y + params["conv_b"].reshape(1, -1, 1, 1)
    scale = params["bn_gamma"] / jnp.sqrt(params["bn_var"] + eps)
    y = (y - params["bn_mean"].reshape(1, -1, 1, 1)) * scale.reshape(1, -1, 1, 1) \
        + params["bn_beta"].reshape(1, -1, 1, 1)
    # Dropout2d(p=0.2): identity in eval mode.
    return jnp.where(y >= 0.0, y, 0.2 * y)             # LeakyReLU(0.2)


def init_params(key, in_channel, out_channel, k=5):
    k_w, k_b, k_g, k_be, k_m, k_v = jax.random.split(key, 6)
    fan = in_channel * k * k
    bound = 1.0 / np.sqrt(fan)
    return {
        "conv_w": jax.random.uniform(k_w, (out_channel, in_channel, k, k),
                                     jnp.float32, -bound, bound),
        "conv_b": jax.random.uniform(k_b, (out_channel,), jnp.float32, -bound, bound),
        "bn_gamma": jax.random.uniform(k_g, (out_channel,), jnp.float32, 0.5, 1.5),
        "bn_beta": jax.random.uniform(k_be, (out_channel,), jnp.float32, -0.5, 0.5),
        "bn_mean": 0.1 * jax.random.normal(k_m, (out_channel,), jnp.float32),
        "bn_var": jax.random.uniform(k_v, (out_channel,), jnp.float32, 0.5, 1.5),
    }


if __name__ == "__main__":
    key = jax.random.PRNGKey(0)
    k_x, k_p = jax.random.split(key)

    in_channel, out_channel = 4, 8
    N, H, W = 2, 16, 16

    x = jax.random.normal(k_x, (N, in_channel, H, W), jnp.float32)   # NCHW, like PyTorch
    params = init_params(k_p, in_channel, out_channel)

    out = jax.block_until_ready(down_layer_forward(x, params))
    ref = jax.block_until_ready(down_layer_reference(x, params))

    assert out.shape == (N, out_channel, H // 2, W // 2), out.shape
    np.testing.assert_allclose(np.asarray(out), np.asarray(ref), rtol=5e-2, atol=5e-2)

    print("KERNEL_OK")
</pallas_src>

<mosaic_0001>
module attributes {stable_mosaic.version = 11 : i64} {
  func.func @_down_layer_kernel(%arg0: i32, %arg1: memref<8x128xbf16, #tpu.memory_space<vmem>>, %arg2: memref<128x128xbf16, #tpu.memory_space<vmem>>, %arg3: memref<8x1xf32, #tpu.memory_space<vmem>>, %arg4: memref<8x128xf32, #tpu.memory_space<vmem>>) attributes {dimension_semantics = [#tpu.dimension_semantics<parallel>], iteration_bounds = array<i64: 1>, scalar_prefetch = 0 : i64, scratch_operands = 0 : i64, tpu.core_type = #tpu.core_type<tc>, window_params = [{pipeline_mode = #tpu.pipeline_mode<synchronous>, transform_indices = @transform_0, window_bounds = array<i64: 8, 128>}, {transform_indices = @transform_1, window_bounds = array<i64: 128, 128>}, {pipeline_mode = #tpu.pipeline_mode<synchronous>, transform_indices = @transform_2, window_bounds = array<i64: 8, 1>}, {transform_indices = @transform_3, window_bounds = array<i64: 8, 128>}]} {
    %c0 = arith.constant 0 : index
    %c0_0 = arith.constant 0 : index
    %0 = vector.load %arg1[%c0, %c0_0] : memref<8x128xbf16, #tpu.memory_space<vmem>>, vector<8x128xbf16>
    %c0_1 = arith.constant 0 : index
    %c0_2 = arith.constant 0 : index
    %1 = vector.load %arg2[%c0_1, %c0_2] : memref<128x128xbf16, #tpu.memory_space<vmem>>, vector<128x128xbf16>
    %cst = arith.constant dense<0.000000e+00> : vector<8x128xf32>
    %2 = tpu.matmul %0, %1, %cst {dimension_numbers = #tpu.dot_dimension_numbers<[1], [0], [0], [1], [0, 0, 1, 1], [], []>} : vector<8x128xbf16>, vector<128x128xbf16>, vector<8x128xf32> -> vector<8x128xf32>
    %c0_3 = arith.constant 0 : index
    %c0_4 = arith.constant 0 : index
    %3 = vector.load %arg3[%c0_3, %c0_4] : memref<8x1xf32, #tpu.memory_space<vmem>>, vector<8x1xf32>
    %4 = vector.broadcast %3 : vector<8x1xf32> to vector<8x128xf32>
    %5 = arith.addf %2, %4 : vector<8x128xf32>
    %cst_5 = arith.constant 2.000000e-01 : f32
    %6 = vector.broadcast %cst_5 : f32 to vector<8x128xf32>
    %7 = arith.mulf %6, %5 : vector<8x128xf32>
    %8 = arith.maximumf %5, %7 : vector<8x128xf32>
    %c0_6 = arith.constant 0 : index
    %c0_7 = arith.constant 0 : index
    %9 = vector.load %arg4[%c0_6, %c0_7] : memref<8x128xf32, #tpu.memory_space<vmem>>, vector<8x128xf32>
    tpu.vector_store %arg4[%c0_6, %c0_7], %8 {strides = array<i32>} : memref<8x128xf32, #tpu.memory_space<vmem>>, vector<8x128xf32>,
    return
  }
  func.func @transform_0(%arg0: i32) -> (i32, i32) {
    %c0_i32 = arith.constant 0 : i32
    %c0_i32_0 = arith.constant 0 : i32
    %c0_i32_1 = arith.constant 0 : i32
    return %c0_i32, %c0_i32_0 : i32, i32
  }
  func.func @transform_1(%arg0: i32) -> (i32, i32) {
    %c0_i32 = arith.constant 0 : i32
    %c0_i32_0 = arith.constant 0 : i32
    return %c0_i32, %arg0 : i32, i32
  }
  func.func @transform_2(%arg0: i32) -> (i32, i32) {
    %c0_i32 = arith.constant 0 : i32
    %c0_i32_0 = arith.constant 0 : i32
    %c0_i32_1 = arith.constant 0 : i32
    return %c0_i32, %c0_i32_0 : i32, i32
  }
  func.func @transform_3(%arg0: i32) -> (i32, i32) {
    %c0_i32 = arith.constant 0 : i32
    %c0_i32_0 = arith.constant 0 : i32
    return %c0_i32, %arg0 : i32, i32
  }
}

</mosaic_0001>

<llo_original>
// kernel: tpu_custom_call.1
$region0: #{tpu_custom_call.1}
  #allocation0 [shape = 'u32[]', space=smem, size = 0x4, offset = 0x4, fixed_abs, tag = 'smem constant byte address 0x4 - core index']
  #allocation1 [shape = 'u32[144,128]{1,0:T(1,128)}', space=vmem, size = 0x12000, scoped, tag = 'internal scratch']
  %s0 = inlined_call_operand.vmem [shape: bf16[8,128], index: 0, kind: input, shape index: {}]
  %s1 = inlined_call_operand.hbm [shape: bf16[128,128], index: 1, kind: input, shape index: {}]
  %s2 = inlined_call_operand.vmem [shape: f32[8,1], index: 2, kind: input, shape index: {}]
  %s3 = inlined_call_operand.hbm [shape: f32[8,128], index: 3, kind: output, shape index: {}]
  %s4 = sld [smem:[#allocation0]]
  $region26: #{tpu_custom_call.1} parent=0
    _
  %s6 = ssub.s32 1, %s4
  %s7 = scalar_select 0, %s6, %s4
  $region1: #{tpu_custom_call.1} parent=0
    #allocation2 [shape = 'u8[32768]{0}', space=vmem, size = 0x8000, scoped, tag = 'input window, operand 1, single buffered']
    #allocation3 [shape = 's32[1]{0}', space=sflag, size = 0x4, scoped, tag = 'scoped memory for tpu_custom_call.1']
    #allocation4 [shape = 's32[1]{0}', space=sflag, size = 0x4, scoped, tag = 'scoped memory for tpu_custom_call.1']
    #allocation5 [shape = 'u8[4096]{0}', space=vmem, size = 0x1000, scoped, tag = 'output window, operand 0, single buffered']
    %8 = vsyncpa [#allocation3], 0
    %9 = vsyncpa [#allocation4], 0
    // Predicated region
    $region2: #{tpu_custom_call.1} parent=1 // pred_check
      _
    $region3: #{tpu_custom_call.1} parent=1 // pred_check_branch
      %11 = sbr.rel (0) target = $region5
    $region4: #{tpu_custom_call.1} parent=1 // pred_region
      _
    $region5: #{tpu_custom_call.1} parent=1 // pred_fallthru
      _
    // Predicated region
    $region6: #{tpu_custom_call.1} parent=1 // pred_check
      _
    $region7: #{tpu_custom_call.1} parent=1 // pred_check_branch
      %13 = sbr.rel (0) target = $region9
    $region8: #{tpu_custom_call.1} parent=1 // pred_region
      %s15 = ssub.s32 1024, 1024
      %16 = vsyncadd [#allocation3], %s15
      %s17 = sshll.u32 [#allocation2], 4
      %s18 = int_to_ptr.vmem [resolvable:$true] %s17
      %23 = dma.hbm_to_vmem [thread:$0]  %s1, 1024, %s18, [#allocation3], 64, 64, 4
    $region9: #{tpu_custom_call.1} parent=1 // pred_fallthru
      _
    // Predicated region
    $region10: #{tpu_custom_call.1} parent=1 // pred_check
      _
    $region11: #{tpu_custom_call.1} parent=1 // pred_check_branch
      %25 = sbr.rel (0) target = $region13
    $region12: #{tpu_custom_call.1} parent=1 // pred_region
      _
    $region13: #{tpu_custom_call.1} parent=1 // pred_fallthru
      _
    // Predicated region
    $region14: #{tpu_custom_call.1} parent=1 // pred_check
      _
    $region15: #{tpu_custom_call.1} parent=1 // pred_check_branch
      %27 = sbr.rel (0) target = $region17
    $region16: #{tpu_custom_call.1} parent=1 // pred_region
      %28 = dma.done [#allocation3], 1024
    $region17: #{tpu_custom_call.1} parent=1 // pred_fallthru
      _
    %v30 = vld [vmem:[%s0] sm:$0xf]
    %v31 = vld [vmem:[#allocation2] sm:$0xf]
    %v32 = vld [vmem:[#allocation2 + $0x4] sm:$0xf]
    %v33 = vld [vmem:[#allocation2 + $0x8] sm:$0xf]
    %v34 = vld [vmem:[#allocation2 + $0xc] sm:$0xf]
    %v35 = vld [vmem:[#allocation2 + $0x10] sm:$0xf]
    %v36 = vld [vmem:[#allocation2 + $0x14] sm:$0xf]
    %v37 = vld [vmem:[#allocation2 + $0x18] sm:$0xf]
    %v38 = vld [vmem:[#allocation2 + $0x1c] sm:$0xf]
    %v39 = vld [vmem:[#allocation2 + $0x20] sm:$0xf]
    %v40 = vld [vmem:[#allocation2 + $0x24] sm:$0xf]
    %v41 = vld [vmem:[#allocation2 + $0x28] sm:$0xf]
    %v42 = vld [vmem:[#allocation2 + $0x2c] sm:$0xf]
    %v43 = vld [vmem:[#allocation2 + $0x30] sm:$0xf]
    %v44 = vld [vmem:[#allocation2 + $0x34] sm:$0xf]
    %v45 = vld [vmem:[#allocation2 + $0x38] sm:$0xf]
    %v46 = vld [vmem:[#allocation2 + $0x3c] sm:$0xf]
    %v47 = vld [vmem:[%s2] sm:$0xff]
    %49 = vset.pattern.permute.xlu0 0
    %50 = vperm.xlu0 %49, %v47
    %v51 = vpop.permute.xlu0 %50
    %v69 = vunpack.c.l.b16 %v31
    %v70 = vunpack.c.l.b16 %v32
    %v71 = vunpack.c.l.b16 %v33
    %v72 = vunpack.c.l.b16 %v34
    %v73 = vunpack.c.l.b16 %v35
    %v74 = vunpack.c.l.b16 %v36
    %v75 = vunpack.c.l.b16 %v37
    %v76 = vunpack.c.l.b16 %v38
    %v77 = vunpack.c.l.b16 %v39
    %v78 = vunpack.c.l.b16 %v40
    %v79 = vunpack.c.l.b16 %v41
    %v80 = vunpack.c.l.b16 %v42
    %v81 = vunpack.c.l.b16 %v43
    %v82 = vunpack.c.l.b16 %v44
    %v83 = vunpack.c.l.b16 %v45
    %v84 = vunpack.c.l.b16 %v46
    %v85 = vpack.c.b16 %v70, %v69
    %v86 = vpack.c.b16 %v72, %v71
    %v87 = vpack.c.b16 %v74, %v73
    %v88 = vpack.c.b16 %v76, %v75
    %v89 = vpack.c.b16 %v78, %v77
    %v90 = vpack.c.b16 %v80, %v79
    %v91 = vpack.c.b16 %v82, %v81
    %v92 = vpack.c.b16 %v84, %v83
    %101 = vmatprep.subr.bf16.mxu0 0
    %102 = vmatpush1.bf16.msra.mxu0 %v92
    %103 = vmatprep.subr.bf16.mxu0 0
    %104 = vmatpush1.bf16.msra.mxu0 %v91
    %105 = vmatprep.subr.bf16.mxu0 0
    %106 = vmatpush1.bf16.msra.mxu0 %v90
    %107 = vmatprep.subr.bf16.mxu0 0
    %108 = vmatpush1.bf16.msra.mxu0 %v89
    %109 = vmatprep.subr.bf16.mxu0 0
    %110 = vmatpush1.bf16.msra.mxu0 %v88
    %111 = vmatprep.subr.bf16.mxu0 0
    %112 = vmatpush1.bf16.msra.mxu0 %v87
    %113 = vmatprep.subr.bf16.mxu0 0
    %114 = vmatpush1.bf16.msra.mxu0 %v86
    %115 = vmatprep.subr.bf16.mxu0 0
    %116 = vmatpush1.bf16.msra.mxu0 %v85
    %117 = vmatprep.subr.bf16.mxu0 0
    %118 = vmatpush2.bf16.msra.mxu0 0
    %119 = vmatprep.subr.bf16.mxu0 0
    %120 = vmatpush2.bf16.msra.mxu0 0
    %121 = vmatprep.subr.bf16.mxu0 0
    %122 = vmatpush2.bf16.msra.mxu0 0
    %123 = vmatprep.subr.bf16.mxu0 0
    %124 = vmatpush2.bf16.msra.mxu0 0
    %125 = vmatprep.subr.bf16.mxu0 0
    %126 = vmatpush2.bf16.msra.mxu0 0
    %127 = vmatprep.subr.bf16.mxu0 0
    %128 = vmatpush2.bf16.msra.mxu0 0
    %129 = vmatprep.subr.bf16.mxu0 0
    %130 = vmatpush2.bf16.msra.mxu0 0
    %131 = vmatprep.subr.bf16.mxu0 0
    %132 = vmatpush2.bf16.msra.mxu0 0
    %133 = vmatprep.mubr.bf16.mxu0 0
    %134 = vmatmul.mubr.bf16.gmra.mxu0 %v30
    %v135 = vpop.f32.mrf.mxu0
    %v136 = vadd.f32 %v51, %v135
    %v137 = vpop.f32.mrf.mxu0
    %v138 = vpop.f32.mrf.mxu0
    %v139 = vpop.f32.mrf.mxu0
    %140 = vdwg.mxu0
    %v141 = vmul.f32 %v136, 0.2
    %v142 = vmax.f32 %v136, %v141
    %143 = vst [vmem:[#allocation5] sm:$0xff] %v142
    // Predicated region
    $region18: #{tpu_custom_call.1} parent=1 // pred_check
      _
    $region19: #{tpu_custom_call.1} parent=1 // pred_check_branch
      %145 = sbr.rel (0) target = $region21
    $region20: #{tpu_custom_call.1} parent=1 // pred_region
      %s147 = ssub.s32 128, 128
      %148 = vsyncadd [#allocation4], %s147
      %s150 = sshll.u32 [#allocation5], 4
      %s151 = int_to_ptr.vmem [resolvable:$true] %s150
      %153 = dma.vmem_to_hbm [thread:$0]  %s151, 128, %s3, [#allocation4]
    $region21: #{tpu_custom_call.1} parent=1 // pred_fallthru
      _
    // Predicated region
    $region22: #{tpu_custom_call.1} parent=1 // pred_check
      _
    $region23: #{tpu_custom_call.1} parent=1 // pred_check_branch
      %155 = sbr.rel (0) target = $region25
    $region24: #{tpu_custom_call.1} parent=1 // pred_region
      %156 = dma.done [#allocation4], 128
    $region25: #{tpu_custom_call.1} parent=1 // pred_fallthru
      _
    %157 = vsyncpa [#allocation3], 1
    %158 = vsyncpa [#allocation4], 1

</llo_original>
